<compile_context>
chip_gen: v6e
topology: v6e:2x2x1
jax: 0.10.0
libtpu: 0.0.40
codegen_flags: <defaults>
</compile_context>

<pallas_src>
import functools

import jax
import jax.numpy as jnp
from jax.experimental import pallas as pl
from jax.experimental.pallas import tpu as pltpu


_ROW_ALIGN = 16            # sublane-friendly for both fp32 (8) and bf16 (16)
_NEG_PAD = -1e30           # softmax-neutral pad value for logits columns


def _round_up(x, m):
    return ((x + m - 1) // m) * m


def _vmem_cap_bytes():
    """Per-core VMEM budget cap with headroom (generation aware)."""
    phys = 64 << 20                              # conservative: v7x per-TC VMEM
    try:
        info = pltpu.get_tpu_info()
        phys = int(getattr(info, "vmem_capacity_bytes", phys)) or phys
    except Exception:
        pass
    return max(32 << 20, phys - (16 << 20))      # leave Mosaic internal headroom


def _pick_tile_and_pad(M, tm_target):
    """Balanced row tiles; >=2 grid steps when there is enough work (v7x 2 TCs)."""
    ntiles = max(1, pl.cdiv(M, tm_target))
    if ntiles == 1 and M >= 2 * _ROW_ALIGN:
        ntiles = 2
    tm_eff = _round_up(pl.cdiv(M, ntiles), _ROW_ALIGN)
    Mp = ntiles * tm_eff
    return tm_eff, Mp, ntiles


def _fit_row_tile(M, tm_target, fixed_bytes, per_row_bytes, cap):
    """Shrink the row tile until the VMEM budget (incl. intermediates) fits."""
    tm = tm_target
    while True:
        tm_eff, Mp, ntiles = _pick_tile_and_pad(M, tm)
        need = fixed_bytes + tm_eff * per_row_bytes
        if need <= cap or tm_eff <= _ROW_ALIGN:
            return tm_eff, Mp, ntiles, need
        tm = max(_ROW_ALIGN, tm_eff // 2)


def _pick_subchunks(tm_eff):
    """2-4 sub-chunks per row tile so exp (EUP) overlaps the MXU dot."""
    for n in (4, 2):
        if tm_eff % (n * 8) == 0 and tm_eff // n >= 64:
            return n
    return 1


# ---------------------------------------------------------------------------
# Pallas kernels
# ---------------------------------------------------------------------------

def _projection_mlp_kernel(xg_ref, xc_ref, w1g_ref, w1c_ref, b1_ref,
                           w2_ref, b2_ref, o_ref, *, compute_dtype):
    """Fused [xg | xc] @ W1 + b1 -> ReLU -> @ W2 + b2 for one row-tile.

    Concat is fused by splitting W1:  cat(xg, xc) @ W1 == xg @ W1g + xc @ W1c.
    """
    xg = xg_ref[...].astype(compute_dtype)                       # (tm, Cp)
    xc = xc_ref[...].astype(compute_dtype)                       # (tm, Cp)
    h = jnp.dot(xg, w1g_ref[...], preferred_element_type=jnp.float32)
    h = h + jnp.dot(xc, w1c_ref[...], preferred_element_type=jnp.float32)
    h = h + b1_ref[...]                                          # (1, Hp) broadcast
    h = jnp.maximum(h, 0.0)                                      # ReLU
    o = jnp.dot(h.astype(compute_dtype), w2_ref[...],
                preferred_element_type=jnp.float32)
    o = o + b2_ref[...]                                          # (1, Op) broadcast
    o_ref[...] = o.astype(o_ref.dtype)


def _embedding_kernel(logits_ref, w_ref, o_ref, *, compute_dtype, n_sub, sub_tm):
    """softmax(logits, -1) @ W (no bias); normalization applied after the dot.

    The row tile is split into `n_sub` statically unrolled sub-chunks so the
    exp (EUP) of chunk i+1 can overlap the MXU dot of chunk i.
    """
    for sub in range(n_sub):                     # static -> straight-line code
        r0 = sub * sub_tm
        z = logits_ref[r0:r0 + sub_tm, :].astype(jnp.float32)    # (sub_tm, Vp)
        z = z - jnp.max(z, axis=-1, keepdims=True)
        e = jnp.exp(z)
        s = jnp.sum(e, axis=-1, keepdims=True)                   # (sub_tm, 1)
        o = jnp.dot(e.astype(compute_dtype), w_ref[...],
                    preferred_element_type=jnp.float32)          # (sub_tm, Op)
        o = o * pl.reciprocal(s, approx=True)                    # EUP slot
        o_ref[r0:r0 + sub_tm, :] = o.astype(o_ref.dtype)


# ---------------------------------------------------------------------------
# One-time parameter preparation (hoisted out of the forward path)
# ---------------------------------------------------------------------------

def prepare_projection_params(w1, b1, w2, b2, C, compute_dtype):
    """w1: (2C, H), b1: (H,), w2: (H, O), b2: (O,) -> padded/cast kernel operands."""
    H = w1.shape[1]
    O = w2.shape[1]
    Cp = _round_up(C, 128)
    Hp = _round_up(H, 128)
    Op = _round_up(O, 128)
    w1g, w1c = w1[:C], w1[C:]
    w1g = jnp.pad(w1g, ((0, Cp - C), (0, Hp - H))).astype(compute_dtype)
    w1c = jnp.pad(w1c, ((0, Cp - C), (0, Hp - H))).astype(compute_dtype)
    w2p = jnp.pad(w2, ((0, Hp - H), (0, Op - O))).astype(compute_dtype)
    b1p = jnp.pad(b1, (0, Hp - H)).reshape(1, Hp).astype(jnp.float32)
    b2p = jnp.pad(b2, (0, Op - O)).reshape(1, Op).astype(jnp.float32)
    return dict(w1g=w1g, w1c=w1c, b1=b1p, w2=w2p, b2=b2p,
                C=C, Cp=Cp, H=H, Hp=Hp, O=O, Op=Op)


def prepare_embedding_params(w, compute_dtype):
    """w: (V, O) (transposed torch Linear weight, no bias) -> padded/cast."""
    V, O = w.shape
    Vp = _round_up(V, 128)
    Op = _round_up(O, 128)
    wp = jnp.pad(w, ((0, Vp - V), (0, Op - O))).astype(compute_dtype)
    return dict(w=wp, V=V, Vp=Vp, O=O, Op=Op)


# ---------------------------------------------------------------------------
# Wrappers calling pallas_call
# ---------------------------------------------------------------------------

def projection_forward(xg2d, xc2d, params, *, tm=None, out_dtype=None):
    """xg2d/xc2d: (M, C) row slabs in native (T*B, C) order."""
    M, C = xg2d.shape
    assert C == params["C"], (C, params["C"])
    Cp, Hp, Op, O = params["Cp"], params["Hp"], params["Op"], params["O"]
    compute_dtype = params["w1g"].dtype
    out_dtype = out_dtype or xg2d.dtype

    cap = _vmem_cap_bytes()
    if tm is None:
        tm = 1024 if cap >= (96 << 20) else 512   # bigger tiles on v5e/v6e

    cbytes = jnp.dtype(compute_dtype).itemsize
    xbytes = jnp.dtype(xg2d.dtype).itemsize
    obytes = jnp.dtype(out_dtype).itemsize
    # Resident (grid-invariant, single-buffered) weights + fp32 biases.
    fixed = (2 * Cp * Hp + Hp * Op) * cbytes + (Hp + Op) * 4
    # Per-row bytes: double-buffered x tiles, output tiles, fp32/compute intermediates.
    per_row = (2 * 2 * Cp * xbytes                # xg + xc tiles, 2 buffers each
               + 2 * Op * obytes                  # output tiles
               + 2 * Cp * cbytes                  # casted xg/xc MXU operands
               + Hp * 4 + Hp * cbytes + Op * 4)   # h (f32), h cast, o (f32)
    tm_eff, Mp, ntiles, need = _fit_row_tile(M, tm, fixed, per_row, cap)
    vmem_limit = int(min(cap, max(32 << 20, int(need * 1.25) + (4 << 20))))

    if Mp != M or Cp != C:
        xg2d = jnp.pad(xg2d, ((0, Mp - M), (0, Cp - C)))
        xc2d = jnp.pad(xc2d, ((0, Mp - M), (0, Cp - C)))

    w_mode = pl.Buffered(1)   # grid-invariant operands: no double buffering

    out = pl.pallas_call(
        functools.partial(_projection_mlp_kernel, compute_dtype=compute_dtype),
        out_shape=jax.ShapeDtypeStruct((Mp, Op), out_dtype),
        grid_spec=pltpu.PrefetchScalarGridSpec(
            num_scalar_prefetch=0,
            grid=(ntiles,),
            in_specs=[
                pl.BlockSpec((tm_eff, Cp), lambda i: (i, 0)),
                pl.BlockSpec((tm_eff, Cp), lambda i: (i, 0)),
                pl.BlockSpec((Cp, Hp), lambda i: (0, 0), pipeline_mode=w_mode),
                pl.BlockSpec((Cp, Hp), lambda i: (0, 0), pipeline_mode=w_mode),
                pl.BlockSpec((1, Hp), lambda i: (0, 0), pipeline_mode=w_mode),
                pl.BlockSpec((Hp, Op), lambda i: (0, 0), pipeline_mode=w_mode),
                pl.BlockSpec((1, Op), lambda i: (0, 0), pipeline_mode=w_mode),
            ],
            out_specs=pl.BlockSpec((tm_eff, Op), lambda i: (i, 0)),
        ),
        compiler_params=pltpu.CompilerParams(
            dimension_semantics=("parallel",),
            vmem_limit_bytes=vmem_limit),
    )(xg2d, xc2d, params["w1g"], params["w1c"], params["b1"],
      params["w2"], params["b2"])
    return out[:M, :O]


def embedding_forward(logits2d, params, *, tm=None, out_dtype=None):
    """logits2d: (M, V) row slab in native (T*B, V) order."""
    M, V = logits2d.shape
    assert V == params["V"], (V, params["V"])
    Vp, Op, O = params["Vp"], params["Op"], params["O"]
    w = params["w"]
    compute_dtype = w.dtype
    out_dtype = out_dtype or logits2d.dtype

    cap = _vmem_cap_bytes()
    if tm is None:
        tm = 1024 if cap >= (96 << 20) else 512

    cbytes = jnp.dtype(compute_dtype).itemsize
    xbytes = jnp.dtype(logits2d.dtype).itemsize
    obytes = jnp.dtype(out_dtype).itemsize
    fixed = Vp * Op * cbytes                      # resident weight (single buffer)
    per_row = (2 * Vp * xbytes                    # logits tiles, double buffered
               + 2 * Op * obytes                  # output tiles
               + Vp * (8 + cbytes)                # z, e (f32) + e cast
               + Op * 4)                          # o (f32)
    tm_eff, Mp, ntiles, need = _fit_row_tile(M, tm, fixed, per_row, cap)
    vmem_limit = int(min(cap, max(32 << 20, int(need * 1.25) + (4 << 20))))

    if Mp != M or Vp != V:
        # Pad logits columns/rows with a large negative -> softmax unchanged,
        # pad rows stay finite (sliced off afterwards anyway).
        logits2d = jnp.pad(logits2d, ((0, Mp - M), (0, Vp - V)),
                           constant_values=_NEG_PAD)

    n_sub = _pick_subchunks(tm_eff)
    sub_tm = tm_eff // n_sub

    out = pl.pallas_call(
        functools.partial(_embedding_kernel, compute_dtype=compute_dtype,
                          n_sub=n_sub, sub_tm=sub_tm),
        out_shape=jax.ShapeDtypeStruct((Mp, Op), out_dtype),
        grid_spec=pltpu.PrefetchScalarGridSpec(
            num_scalar_prefetch=0,
            grid=(ntiles,),
            in_specs=[
                pl.BlockSpec((tm_eff, Vp), lambda i: (i, 0)),
                pl.BlockSpec((Vp, Op), lambda i: (0, 0),
                             pipeline_mode=pl.Buffered(1)),
            ],
            out_specs=pl.BlockSpec((tm_eff, Op), lambda i: (i, 0)),
        ),
        compiler_params=pltpu.CompilerParams(
            dimension_semantics=("parallel",),
            vmem_limit_bytes=vmem_limit),
    )(logits2d, w)
    return out[:M, :O]


# ---------------------------------------------------------------------------
# VLMapper equivalent (parameter construction + glue in plain JAX)
# ---------------------------------------------------------------------------

class VLMapperPallas:
    def __init__(self, cfg, in_features, out_features,
                 gloss_id2str=None, gls2embed=None, key=None,
                 tm=None, compute_dtype=jnp.bfloat16):
        self.type = cfg.get("type", "projection")
        self.tm = tm
        self.compute_dtype = compute_dtype
        key = key if key is not None else jax.random.PRNGKey(0)

        if self.type == "projection":
            self.hidden_size = in_features
            k1, k2, k3, k4 = jax.random.split(key, 4)
            # torch.nn.Linear default init: U(-1/sqrt(fan_in), 1/sqrt(fan_in))
            fan1 = in_features * 2
            lim1 = 1.0 / (fan1 ** 0.5)
            # stored pre-transposed: (in, out)
            self.w1 = jax.random.uniform(k1, (fan1, self.hidden_size),
                                         jnp.float32, -lim1, lim1)
            self.b1 = jax.random.uniform(k2, (self.hidden_size,),
                                         jnp.float32, -lim1, lim1)
            fan2 = self.hidden_size
            lim2 = 1.0 / (fan2 ** 0.5)
            self.w2 = jax.random.uniform(k3, (fan2, out_features),
                                         jnp.float32, -lim2, lim2)
            self.b2 = jax.random.uniform(k4, (out_features,),
                                         jnp.float32, -lim2, lim2)
            # One-time weight prep (split/pad/cast) hoisted out of forward.
            self._params = prepare_projection_params(
                self.w1, self.b1, self.w2, self.b2, C=in_features,
                compute_dtype=compute_dtype)
        elif self.type == "embedding":
            assert in_features == len(gloss_id2str), (in_features, gloss_id2str)
            # torch weight is (out, in); we build its transpose (in, out) directly.
            cols = []
            for i in range(in_features):
                s = gloss_id2str[i]
                if s in gls2embed:
                    cols.append(gls2embed[s])
                else:
                    cols.append(jnp.zeros((out_features,), jnp.float32))
            self.w = jnp.stack(cols, axis=0)      # (in_features, out_features)
            self._params = prepare_embedding_params(self.w, compute_dtype)
        else:
            raise ValueError(self.type)

    def __call__(self, visual_outputs, lengths=None):
        if self.type == "projection":
            g = visual_outputs["gloss_feature"]   # (T, B, C)
            c = visual_outputs["conv_feature"]    # (T, B, C)
            T, B, C = g.shape
            # Keep (T,B,C) row order (pure reshape, no transpose/concat copy);
            # rows are independent so only the small output needs permuting.
            xg2d = g.reshape(T * B, C)
            xc2d = c.reshape(T * B, C)
            out = projection_forward(xg2d, xc2d, self._params, tm=self.tm)
            return jnp.transpose(out.reshape(T, B, -1), (1, 0, 2))   # (B, T, O)
        elif self.type == "embedding":
            logits = visual_outputs["sequence_logits"]   # (T, B, V)
            T, B, V = logits.shape
            out = embedding_forward(logits.reshape(T * B, V), self._params,
                                    tm=self.tm)
            return jnp.transpose(out.reshape(T, B, -1), (1, 0, 2))   # (B, T, O)
        else:
            raise ValueError


# ---------------------------------------------------------------------------
# Pure-JAX references for verification
# ---------------------------------------------------------------------------

def _projection_ref(g, c, w1, b1, w2, b2):
    x = jnp.concatenate(
        (jnp.transpose(g, (1, 0, 2)), jnp.transpose(c, (1, 0, 2))), axis=-1)
    h = jnp.maximum(x @ w1 + b1, 0.0)
    return h @ w2 + b2


def _embedding_ref(logits, w):
    p = jax.nn.softmax(logits, axis=-1)
    return jnp.transpose(p, (1, 0, 2)) @ w


# ---------------------------------------------------------------------------

if __name__ == "__main__":
    key = jax.random.PRNGKey(0)
    kg, kc, kl, kp, ke = jax.random.split(key, 5)

    # Small shapes: seq T=8, batch B=2, features C=32, out O=16.
    T, B, C, O = 8, 2, 32, 16

    gloss_feature = jax.random.normal(kg, (T, B, C), jnp.float32)
    conv_feature = jax.random.normal(kc, (T, B, C), jnp.float32)

    # ---- projection type, fp32 compute (exact path) ----
    mapper_proj_f32 = VLMapperPallas({"type": "projection"}, C, O, key=kp,
                                     compute_dtype=jnp.float32)
    out_proj_f32 = jax.block_until_ready(
        mapper_proj_f32({"gloss_feature": gloss_feature,
                         "conv_feature": conv_feature}))
    ref_proj = _projection_ref(gloss_feature, conv_feature,
                               mapper_proj_f32.w1, mapper_proj_f32.b1,
                               mapper_proj_f32.w2, mapper_proj_f32.b2)
    assert out_proj_f32.shape == (B, T, O)
    assert jnp.allclose(out_proj_f32, ref_proj, atol=1e-5, rtol=1e-5)

    # ---- projection type, default bf16 MXU operands (f32 accumulation) ----
    mapper_proj = VLMapperPallas({"type": "projection"}, C, O, key=kp)
    out_proj = jax.block_until_ready(
        mapper_proj({"gloss_feature": gloss_feature,
                     "conv_feature": conv_feature}))
    assert out_proj.shape == (B, T, O)
    assert jnp.allclose(out_proj, ref_proj, atol=5e-2, rtol=5e-2)

    # ---- embedding type ----
    V = 32  # gloss vocabulary size == in_features for embedding type
    gloss_id2str = {i: f"g{i}" for i in range(V)}
    gls2embed = {f"g{i}": jax.random.normal(jax.random.fold_in(ke, i),
                                            (O,), jnp.float32)
                 for i in range(V) if i % 2 == 0}   # odd glosses -> zero column
    sequence_logits = jax.random.normal(kl, (T, B, V), jnp.float32)

    # fp32 compute path (approx reciprocal -> slightly relaxed tolerance)
    mapper_emb_f32 = VLMapperPallas({"type": "embedding"}, V, O,
                                    gloss_id2str=gloss_id2str,
                                    gls2embed=gls2embed,
                                    compute_dtype=jnp.float32)
    out_emb_f32 = jax.block_until_ready(
        mapper_emb_f32({"sequence_logits": sequence_logits}))
    ref_emb = _embedding_ref(sequence_logits, mapper_emb_f32.w)
    assert out_emb_f32.shape == (B, T, O)
    assert jnp.allclose(out_emb_f32, ref_emb, atol=5e-3, rtol=5e-3)

    # default bf16 MXU operands
    mapper_emb = VLMapperPallas({"type": "embedding"}, V, O,
                                gloss_id2str=gloss_id2str, gls2embed=gls2embed)
    out_emb = jax.block_until_ready(
        mapper_emb({"sequence_logits": sequence_logits}))
    assert out_emb.shape == (B, T, O)
    assert jnp.allclose(out_emb, ref_emb, atol=5e-2, rtol=5e-2)

    print("KERNEL_OK")
</pallas_src>

<mosaic_0001>
module attributes {stable_mosaic.version = 11 : i64} {
  func.func @_projection_mlp_kernel(%arg0: i32, %arg1: memref<16x128xf32, #tpu.memory_space<vmem>>, %arg2: memref<16x128xf32, #tpu.memory_space<vmem>>, %arg3: memref<128x128xf32, #tpu.memory_space<vmem>>, %arg4: memref<128x128xf32, #tpu.memory_space<vmem>>, %arg5: memref<1x128xf32, #tpu.memory_space<vmem>>, %arg6: memref<128x128xf32, #tpu.memory_space<vmem>>, %arg7: memref<1x128xf32, #tpu.memory_space<vmem>>, %arg8: memref<16x128xf32, #tpu.memory_space<vmem>>) attributes {dimension_semantics = [#tpu.dimension_semantics<parallel>], iteration_bounds = array<i64: 1>, scalar_prefetch = 0 : i64, scratch_operands = 0 : i64, tpu.core_type = #tpu.core_type<tc>, window_params = [{transform_indices = @transform_0, window_bounds = array<i64: 16, 128>}, {transform_indices = @transform_1, window_bounds = array<i64: 16, 128>}, {pipeline_mode = #tpu.pipeline_mode<synchronous>, transform_indices = @transform_2, window_bounds = array<i64: 128, 128>}, {pipeline_mode = #tpu.pipeline_mode<synchronous>, transform_indices = @transform_3, window_bounds = array<i64: 128, 128>}, {pipeline_mode = #tpu.pipeline_mode<synchronous>, transform_indices = @transform_4, window_bounds = array<i64: 1, 128>}, {pipeline_mode = #tpu.pipeline_mode<synchronous>, transform_indices = @transform_5, window_bounds = array<i64: 128, 128>}, {pipeline_mode = #tpu.pipeline_mode<synchronous>, transform_indices = @transform_6, window_bounds = array<i64: 1, 128>}, {transform_indices = @transform_7, window_bounds = array<i64: 16, 128>}]} {
    %c0 = arith.constant 0 : index
    %c0_0 = arith.constant 0 : index
    %0 = vector.load %arg1[%c0, %c0_0] : memref<16x128xf32, #tpu.memory_space<vmem>>, vector<16x128xf32>
    %c0_1 = arith.constant 0 : index
    %c0_2 = arith.constant 0 : index
    %1 = vector.load %arg2[%c0_1, %c0_2] : memref<16x128xf32, #tpu.memory_space<vmem>>, vector<16x128xf32>
    %c0_3 = arith.constant 0 : index
    %c0_4 = arith.constant 0 : index
    %2 = vector.load %arg3[%c0_3, %c0_4] : memref<128x128xf32, #tpu.memory_space<vmem>>, vector<128x128xf32>
    %cst = arith.constant dense<0.000000e+00> : vector<16x128xf32>
    %3 = tpu.matmul %0, %2, %cst {dimension_numbers = #tpu.dot_dimension_numbers<[1], [0], [0], [1], [0, 0, 1, 1], [], []>} : vector<16x128xf32>, vector<128x128xf32>, vector<16x128xf32> -> vector<16x128xf32>
    %c0_5 = arith.constant 0 : index
    %c0_6 = arith.constant 0 : index
    %4 = vector.load %arg4[%c0_5, %c0_6] : memref<128x128xf32, #tpu.memory_space<vmem>>, vector<128x128xf32>
    %cst_7 = arith.constant dense<0.000000e+00> : vector<16x128xf32>
    %5 = tpu.matmul %1, %4, %cst_7 {dimension_numbers = #tpu.dot_dimension_numbers<[1], [0], [0], [1], [0, 0, 1, 1], [], []>} : vector<16x128xf32>, vector<128x128xf32>, vector<16x128xf32> -> vector<16x128xf32>
    %6 = arith.addf %3, %5 : vector<16x128xf32>
    %c0_8 = arith.constant 0 : index
    %c0_9 = arith.constant 0 : index
    %7 = vector.load %arg5[%c0_8, %c0_9] : memref<1x128xf32, #tpu.memory_space<vmem>>, vector<1x128xf32>
    %8 = vector.broadcast %7 : vector<1x128xf32> to vector<16x128xf32>
    %9 = arith.addf %6, %8 : vector<16x128xf32>
    %cst_10 = arith.constant 0.000000e+00 : f32
    %10 = vector.broadcast %cst_10 : f32 to vector<16x128xf32>
    %11 = arith.maximumf %9, %10 : vector<16x128xf32>
    %c0_11 = arith.constant 0 : index
    %c0_12 = arith.constant 0 : index
    %12 = vector.load %arg6[%c0_11, %c0_12] : memref<128x128xf32, #tpu.memory_space<vmem>>, vector<128x128xf32>
    %cst_13 = arith.constant dense<0.000000e+00> : vector<16x128xf32>
    %13 = tpu.matmul %11, %12, %cst_13 {dimension_numbers = #tpu.dot_dimension_numbers<[1], [0], [0], [1], [0, 0, 1, 1], [], []>} : vector<16x128xf32>, vector<128x128xf32>, vector<16x128xf32> -> vector<16x128xf32>
    %c0_14 = arith.constant 0 : index
    %c0_15 = arith.constant 0 : index
    %14 = vector.load %arg7[%c0_14, %c0_15] : memref<1x128xf32, #tpu.memory_space<vmem>>, vector<1x128xf32>
    %15 = vector.broadcast %14 : vector<1x128xf32> to vector<16x128xf32>
    %16 = arith.addf %13, %15 : vector<16x128xf32>
    %c0_16 = arith.constant 0 : index
    %c0_17 = arith.constant 0 : index
    %17 = vector.load %arg8[%c0_16, %c0_17] : memref<16x128xf32, #tpu.memory_space<vmem>>, vector<16x128xf32>
    tpu.vector_store %arg8[%c0_16, %c0_17], %16 {strides = array<i32>} : memref<16x128xf32, #tpu.memory_space<vmem>>, vector<16x128xf32>,
    return
  }
  func.func @transform_0(%arg0: i32) -> (i32, i32) {
    %c0_i32 = arith.constant 0 : i32
    %c0_i32_0 = arith.constant 0 : i32
    return %arg0, %c0_i32 : i32, i32
  }
  func.func @transform_1(%arg0: i32) -> (i32, i32) {
    %c0_i32 = arith.constant 0 : i32
    %c0_i32_0 = arith.constant 0 : i32
    return %arg0, %c0_i32 : i32, i32
  }
  func.func @transform_2(%arg0: i32) -> (i32, i32) {
    %c0_i32 = arith.constant 0 : i32
    %c0_i32_0 = arith.constant 0 : i32
    %c0_i32_1 = arith.constant 0 : i32
    return %c0_i32, %c0_i32_0 : i32, i32
  }
  func.func @transform_3(%arg0: i32) -> (i32, i32) {
    %c0_i32 = arith.constant 0 : i32
    %c0_i32_0 = arith.constant 0 : i32
    %c0_i32_1 = arith.constant 0 : i32
    return %c0_i32, %c0_i32_0 : i32, i32
  }
  func.func @transform_4(%arg0: i32) -> (i32, i32) {
    %c0_i32 = arith.constant 0 : i32
    %c0_i32_0 = arith.constant 0 : i32
    %c0_i32_1 = arith.constant 0 : i32
    return %c0_i32, %c0_i32_0 : i32, i32
  }
  func.func @transform_5(%arg0: i32) -> (i32, i32) {
    %c0_i32 = arith.constant 0 : i32
    %c0_i32_0 = arith.constant 0 : i32
    %c0_i32_1 = arith.constant 0 : i32
    return %c0_i32, %c0_i32_0 : i32, i32
  }
  func.func @transform_6(%arg0: i32) -> (i32, i32) {
    %c0_i32 = arith.constant 0 : i32
    %c0_i32_0 = arith.constant 0 : i32
    %c0_i32_1 = arith.constant 0 : i32
    return %c0_i32, %c0_i32_0 : i32, i32
  }
  func.func @transform_7(%arg0: i32) -> (i32, i32) {
    %c0_i32 = arith.constant 0 : i32
    %c0_i32_0 = arith.constant 0 : i32
    return %arg0, %c0_i32 : i32, i32
  }
}

</mosaic_0001>

<llo_original>
// kernel: tpu_custom_call.1
$region0: #{tpu_custom_call.1}
  #allocation0 [shape = 'u32[]', space=smem, size = 0x4, offset = 0x4, fixed_abs, tag = 'smem constant byte address 0x4 - core index']
  #allocation1 [shape = 'u32[144,128]{1,0:T(1,128)}', space=vmem, size = 0x12000, scoped, tag = 'internal scratch']
  %s0 = inlined_call_operand.hbm [shape: f32[16,128], index: 0, kind: input, shape index: {}]
  %s1 = inlined_call_operand.hbm [shape: f32[16,128], index: 1, kind: input, shape index: {}]
  %s2 = inlined_call_operand.hbm [shape: f32[128,128], index: 2, kind: input, shape index: {}]
  %s3 = inlined_call_operand.hbm [shape: f32[128,128], index: 3, kind: input, shape index: {}]
  %s4 = inlined_call_operand.vmem [shape: f32[1,128], index: 4, kind: input, shape index: {}]
  %s5 = inlined_call_operand.hbm [shape: f32[128,128], index: 5, kind: input, shape index: {}]
  %s6 = inlined_call_operand.vmem [shape: f32[1,128], index: 6, kind: input, shape index: {}]
  %s7 = inlined_call_operand.hbm [shape: f32[16,128], index: 7, kind: output, shape index: {}]
  %s8 = sld [smem:[#allocation0]]
  $region58: #{tpu_custom_call.1} parent=0
    _
  %s10 = ssub.s32 1, %s8
  %s11 = scalar_select 0, %s10, %s8
  $region1: #{tpu_custom_call.1} parent=0
    #allocation2 [shape = 'u8[8192]{0}', space=vmem, size = 0x2000, scoped, tag = 'input window, operand 0, single buffered']
    #allocation3 [shape = 's32[1]{0}', space=sflag, size = 0x4, scoped, tag = 'scoped memory for tpu_custom_call.1']
    #allocation4 [shape = 's32[1]{0}', space=sflag, size = 0x4, scoped, tag = 'scoped memory for tpu_custom_call.1']
    #allocation5 [shape = 'u8[8192]{0}', space=vmem, size = 0x2000, scoped, tag = 'input window, operand 1, single buffered']
    #allocation6 [shape = 's32[1]{0}', space=sflag, size = 0x4, scoped, tag = 'scoped memory for tpu_custom_call.1']
    #allocation7 [shape = 'u8[65536]{0}', space=vmem, size = 0x10000, scoped, tag = 'input window, operand 2, single buffered']
    #allocation8 [shape = 'u8[65536]{0}', space=vmem, size = 0x10000, scoped, tag = 'input window, operand 3, single buffered']
    #allocation9 [shape = 's32[1]{0}', space=sflag, size = 0x4, scoped, tag = 'scoped memory for tpu_custom_call.1']
    #allocation10 [shape = 'u8[65536]{0}', space=vmem, size = 0x10000, scoped, tag = 'input window, operand 5, single buffered']
    #allocation11 [shape = 'u8[8192]{0}', space=vmem, size = 0x2000, scoped, tag = 'output window, operand 0, single buffered']
    %12 = vsyncpa [#allocation3], 0
    %13 = vsyncpa [#allocation6], 0
    %14 = vsyncpa [#allocation9], 0
    %15 = vsyncpa [#allocation4], 0
    // Predicated region
    $region2: #{tpu_custom_call.1} parent=1 // pred_check
      _
    $region3: #{tpu_custom_call.1} parent=1 // pred_check_branch
      %17 = sbr.rel (0) target = $region5
    $region4: #{tpu_custom_call.1} parent=1 // pred_region
      %s19 = ssub.s32 256, 256
      %20 = vsyncadd [#allocation3], %s19
      %s21 = sshll.u32 [#allocation2], 4
      %s22 = int_to_ptr.vmem [resolvable:$true] %s21
      %27 = dma.hbm_to_vmem [thread:$0]  %s0, 256, %s22, [#allocation3], 128, 128, 8
    $region5: #{tpu_custom_call.1} parent=1 // pred_fallthru
      _
    // Predicated region
    $region6: #{tpu_custom_call.1} parent=1 // pred_check
      _
    $region7: #{tpu_custom_call.1} parent=1 // pred_check_branch
      %29 = sbr.rel (0) target = $region9
    $region8: #{tpu_custom_call.1} parent=1 // pred_region
      %s31 = ssub.s32 256, 256
      %32 = vsyncadd [#allocation6], %s31
      %s33 = sshll.u32 [#allocation5], 4
      %s34 = int_to_ptr.vmem [resolvable:$true] %s33
      %39 = dma.hbm_to_vmem [thread:$0]  %s1, 256, %s34, [#allocation6], 128, 128, 8
    $region9: #{tpu_custom_call.1} parent=1 // pred_fallthru
      _
    // Predicated region
    $region10: #{tpu_custom_call.1} parent=1 // pred_check
      _
    $region11: #{tpu_custom_call.1} parent=1 // pred_check_branch
      %41 = sbr.rel (0) target = $region13
    $region12: #{tpu_custom_call.1} parent=1 // pred_region
      %s43 = ssub.s32 2048, 2048
      %44 = vsyncadd [#allocation6], %s43
      %s45 = sshll.u32 [#allocation7], 4
      %s46 = int_to_ptr.vmem [resolvable:$true] %s45
      %51 = dma.hbm_to_vmem [thread:$0]  %s2, 2048, %s46, [#allocation6], 128, 128, 8
    $region13: #{tpu_custom_call.1} parent=1 // pred_fallthru
      _
    // Predicated region
    $region14: #{tpu_custom_call.1} parent=1 // pred_check
      _
    $region15: #{tpu_custom_call.1} parent=1 // pred_check_branch
      %53 = sbr.rel (0) target = $region17
    $region16: #{tpu_custom_call.1} parent=1 // pred_region
      %s55 = ssub.s32 2048, 2048
      %56 = vsyncadd [#allocation9], %s55
      %s57 = sshll.u32 [#allocation8], 4
      %s58 = int_to_ptr.vmem [resolvable:$true] %s57
      %63 = dma.hbm_to_vmem [thread:$0]  %s3, 2048, %s58, [#allocation9], 128, 128, 8
    $region17: #{tpu_custom_call.1} parent=1 // pred_fallthru
      _
    // Predicated region
    $region18: #{tpu_custom_call.1} parent=1 // pred_check
      _
    $region19: #{tpu_custom_call.1} parent=1 // pred_check_branch
      %65 = sbr.rel (0) target = $region21
    $region20: #{tpu_custom_call.1} parent=1 // pred_region
      _
    $region21: #{tpu_custom_call.1} parent=1 // pred_fallthru
      _
    // Predicated region
    $region22: #{tpu_custom_call.1} parent=1 // pred_check
      _
    $region23: #{tpu_custom_call.1} parent=1 // pred_check_branch
      %67 = sbr.rel (0) target = $region25
    $region24: #{tpu_custom_call.1} parent=1 // pred_region
      %s69 = ssub.s32 2048, 2048
      %70 = vsyncadd [#allocation9], %s69
      %s71 = sshll.u32 [#allocation10], 4
      %s72 = int_to_ptr.vmem [resolvable:$true] %s71
      %77 = dma.hbm_to_vmem [thread:$0]  %s5, 2048, %s72, [#allocation9], 128, 128, 8
    $region25: #{tpu_custom_call.1} parent=1 // pred_fallthru
      _
    // Predicated region
    $region26: #{tpu_custom_call.1} parent=1 // pred_check
      _
    $region27: #{tpu_custom_call.1} parent=1 // pred_check_branch
      %79 = sbr.rel (0) target = $region29
    $region28: #{tpu_custom_call.1} parent=1 // pred_region
      _
    $region29: #{tpu_custom_call.1} parent=1 // pred_fallthru
      _
    // Predicated region
    $region30: #{tpu_custom_call.1} parent=1 // pred_check
      _
    $region31: #{tpu_custom_call.1} parent=1 // pred_check_branch
      %81 = sbr.rel (0) target = $region33
    $region32: #{tpu_custom_call.1} parent=1 // pred_region
      %82 = dma.done [#allocation3], 256
    $region33: #{tpu_custom_call.1} parent=1 // pred_fallthru
      _
    // Predicated region
    $region34: #{tpu_custom_call.1} parent=1 // pred_check
      _
    $region35: #{tpu_custom_call.1} parent=1 // pred_check_branch
      %84 = sbr.rel (0) target = $region37
    $region36: #{tpu_custom_call.1} parent=1 // pred_region
      %85 = dma.done [#allocation6], 256
    $region37: #{tpu_custom_call.1} parent=1 // pred_fallthru
      _
    // Predicated region
    $region38: #{tpu_custom_call.1} parent=1 // pred_check
      _
    $region39: #{tpu_custom_call.1} parent=1 // pred_check_branch
      %87 = sbr.rel (0) target = $region41
    $region40: #{tpu_custom_call.1} parent=1 // pred_region
      %88 = dma.done [#allocation6], 2048
    $region41: #{tpu_custom_call.1} parent=1 // pred_fallthru
      _
    // Predicated region
    $region42: #{tpu_custom_call.1} parent=1 // pred_check
      _
    $region43: #{tpu_custom_call.1} parent=1 // pred_check_branch
      %90 = sbr.rel (0) target = $region45
    $region44: #{tpu_custom_call.1} parent=1 // pred_region
      %91 = dma.done [#allocation9], 2048
    $region45: #{tpu_custom_call.1} parent=1 // pred_fallthru
      _
    // Predicated region
    $region46: #{tpu_custom_call.1} parent=1 // pred_check
      _
    $region47: #{tpu_custom_call.1} parent=1 // pred_check_branch
      %93 = sbr.rel (0) target = $region49
    $region48: #{tpu_custom_call.1} parent=1 // pred_region
      %94 = dma.done [#allocation9], 2048
    $region49: #{tpu_custom_call.1} parent=1 // pred_fallthru
      _
    %v95 = vld [vmem:[#allocation2] sm:$0xff]
    %v96 = vld [vmem:[#allocation2 + $0x8] sm:$0xff]
    %v97 = vld [vmem:[#allocation5] sm:$0xff]
    %v98 = vld [vmem:[#allocation5 + $0x8] sm:$0xff]
    %v99 = vld [vmem:[#allocation7] sm:$0xff]
    %v100 = vld [vmem:[#allocation7 + $0x8] sm:$0xff]
    %v101 = vld [vmem:[#allocation7 + $0x10] sm:$0xff]
    %v102 = vld [vmem:[#allocation7 + $0x18] sm:$0xff]
    %v103 = vld [vmem:[#allocation7 + $0x20] sm:$0xff]
    %v104 = vld [vmem:[#allocation7 + $0x28] sm:$0xff]
    %v105 = vld [vmem:[#allocation7 + $0x30] sm:$0xff]
    %v106 = vld [vmem:[#allocation7 + $0x38] sm:$0xff]
    %v107 = vld [vmem:[#allocation7 + $0x40] sm:$0xff]
    %v108 = vld [vmem:[#allocation7 + $0x48] sm:$0xff]
    %v109 = vld [vmem:[#allocation7 + $0x50] sm:$0xff]
    %v110 = vld [vmem:[#allocation7 + $0x58] sm:$0xff]
    %v111 = vld [vmem:[#allocation7 + $0x60] sm:$0xff]
    %v112 = vld [vmem:[#allocation7 + $0x68] sm:$0xff]
    %v113 = vld [vmem:[#allocation7 + $0x70] sm:$0xff]
    %v114 = vld [vmem:[#allocation7 + $0x78] sm:$0xff]
    %v115 = vld [vmem:[#allocation8] sm:$0xff]
    %v116 = vld [vmem:[#allocation8 + $0x8] sm:$0xff]
    %v117 = vld [vmem:[#allocation8 + $0x10] sm:$0xff]
    %v118 = vld [vmem:[#allocation8 + $0x18] sm:$0xff]
    %v119 = vld [vmem:[#allocation8 + $0x20] sm:$0xff]
    %v120 = vld [vmem:[#allocation8 + $0x28] sm:$0xff]
    %v121 = vld [vmem:[#allocation8 + $0x30] sm:$0xff]
    %v122 = vld [vmem:[#allocation8 + $0x38] sm:$0xff]
    %v123 = vld [vmem:[#allocation8 + $0x40] sm:$0xff]
    %v124 = vld [vmem:[#allocation8 + $0x48] sm:$0xff]
    %v125 = vld [vmem:[#allocation8 + $0x50] sm:$0xff]
    %v126 = vld [vmem:[#allocation8 + $0x58] sm:$0xff]
    %v127 = vld [vmem:[#allocation8 + $0x60] sm:$0xff]
    %v128 = vld [vmem:[#allocation8 + $0x68] sm:$0xff]
    %v129 = vld [vmem:[#allocation8 + $0x70] sm:$0xff]
    %v130 = vld [vmem:[#allocation8 + $0x78] sm:$0xff]
    %131 = vmatprep.subr.mxu0 0.0
    %132 = vmatpush1.msra.mxu0 %v130
    %133 = vmatprep.subr.mxu0 0.0
    %134 = vmatpush1.msra.mxu0 %v129
    %135 = vmatprep.subr.mxu0 0.0
    %136 = vmatpush1.msra.mxu0 %v128
    %137 = vmatprep.subr.mxu0 0.0
    %138 = vmatpush1.msra.mxu0 %v127
    %139 = vmatprep.subr.mxu0 0.0
    %140 = vmatpush1.msra.mxu0 %v126
    %141 = vmatprep.subr.mxu0 0.0
    %142 = vmatpush1.msra.mxu0 %v125
    %143 = vmatprep.subr.mxu0 0.0
    %144 = vmatpush1.msra.mxu0 %v124
    %145 = vmatprep.subr.mxu0 0.0
    %146 = vmatpush1.msra.mxu0 %v123
    %147 = vmatprep.subr.mxu0 0.0
    %148 = vmatpush1.msra.mxu0 %v122
    %149 = vmatprep.subr.mxu0 0.0
    %150 = vmatpush1.msra.mxu0 %v121
    %151 = vmatprep.subr.mxu0 0.0
    %152 = vmatpush1.msra.mxu0 %v120
    %153 = vmatprep.subr.mxu0 0.0
    %154 = vmatpush1.msra.mxu0 %v119
    %155 = vmatprep.subr.mxu0 0.0
    %156 = vmatpush1.msra.mxu0 %v118
    %157 = vmatprep.subr.mxu0 0.0
    %158 = vmatpush1.msra.mxu0 %v117
    %159 = vmatprep.subr.mxu0 0.0
    %160 = vmatpush1.msra.mxu0 %v116
    %161 = vmatprep.subr.mxu0 0.0
    %162 = vmatpush1.msra.mxu0 %v115
    %163 = vmatprep.subr.mxu0 0.0
    %164 = vmatpush2.msra.mxu0 0.0
    %165 = vmatprep.subr.mxu0 0.0
    %166 = vmatpush2.msra.mxu0 0.0
    %167 = vmatprep.subr.mxu0 0.0
    %168 = vmatpush2.msra.mxu0 0.0
    %169 = vmatprep.subr.mxu0 0.0
    %170 = vmatpush2.msra.mxu0 0.0
    %171 = vmatprep.subr.mxu0 0.0
    %172 = vmatpush2.msra.mxu0 0.0
    %173 = vmatprep.subr.mxu0 0.0
    %174 = vmatpush2.msra.mxu0 0.0
    %175 = vmatprep.subr.mxu0 0.0
    %176 = vmatpush2.msra.mxu0 0.0
    %177 = vmatprep.subr.mxu0 0.0
    %178 = vmatpush2.msra.mxu0 0.0
    %179 = vmatprep.subr.mxu0 0.0
    %180 = vmatpush2.msra.mxu0 0.0
    %181 = vmatprep.subr.mxu0 0.0
    %182 = vmatpush2.msra.mxu0 0.0
    %183 = vmatprep.subr.mxu0 0.0
    %184 = vmatpush2.msra.mxu0 0.0
    %185 = vmatprep.subr.mxu0 0.0
    %186 = vmatpush2.msra.mxu0 0.0
    %187 = vmatprep.subr.mxu0 0.0
    %188 = vmatpush2.msra.mxu0 0.0
    %189 = vmatprep.subr.mxu0 0.0
    %190 = vmatpush2.msra.mxu0 0.0
    %191 = vmatprep.subr.mxu0 0.0
    %192 = vmatpush2.msra.mxu0 0.0
    %193 = vmatprep.subr.mxu0 0.0
    %194 = vmatpush2.msra.mxu0 0.0
    %195 = vmatprep.mubr.f32.mxu0 0.0
    %196 = vmatmul.mubr.f32.gmra.mxu0 %v97
    %v197 = vpop.f32.mrf.mxu0
    %v198 = vadd.f32 0.0, %v197
    %v199 = vpop.f32.mrf.mxu0
    %200 = vmatprep.mubr.f32.mxu0 0.0
    %201 = vmatmul.mubr.f32.gmra.mxu0 %v98
    %v202 = vpop.f32.mrf.mxu0
    %v203 = vadd.f32 0.0, %v202
    %v204 = vpop.f32.mrf.mxu0
    %205 = vdwg.mxu0
    %206 = vmatprep.subr.mxu0 0.0
    %207 = vmatpush1.msra.mxu0 %v114
    %208 = vmatprep.subr.mxu0 0.0
    %209 = vmatpush1.msra.mxu0 %v113
    %210 = vmatprep.subr.mxu0 0.0
    %211 = vmatpush1.msra.mxu0 %v112
    %212 = vmatprep.subr.mxu0 0.0
    %213 = vmatpush1.msra.mxu0 %v111
    %214 = vmatprep.subr.mxu0 0.0
    %215 = vmatpush1.msra.mxu0 %v110
    %216 = vmatprep.subr.mxu0 0.0
    %217 = vmatpush1.msra.mxu0 %v109
    %218 = vmatprep.subr.mxu0 0.0
    %219 = vmatpush1.msra.mxu0 %v108
    %220 = vmatprep.subr.mxu0 0.0
    %221 = vmatpush1.msra.mxu0 %v107
    %222 = vmatprep.subr.mxu0 0.0
    %223 = vmatpush1.msra.mxu0 %v106
    %224 = vmatprep.subr.mxu0 0.0
    %225 = vmatpush1.msra.mxu0 %v105
    %226 = vmatprep.subr.mxu0 0.0
    %227 = vmatpush1.msra.mxu0 %v104
    %228 = vmatprep.subr.mxu0 0.0
    %229 = vmatpush1.msra.mxu0 %v103
    %230 = vmatprep.subr.mxu0 0.0
    %231 = vmatpush1.msra.mxu0 %v102
    %232 = vmatprep.subr.mxu0 0.0
    %233 = vmatpush1.msra.mxu0 %v101
    %234 = vmatprep.subr.mxu0 0.0
    %235 = vmatpush1.msra.mxu0 %v100
    %236 = vmatprep.subr.mxu0 0.0
    %237 = vmatpush1.msra.mxu0 %v99
    %238 = vmatprep.subr.mxu0 0.0
    %239 = vmatpush2.msra.mxu0 0.0
    %240 = vmatprep.subr.mxu0 0.0
    %241 = vmatpush2.msra.mxu0 0.0
    %242 = vmatprep.subr.mxu0 0.0
    %243 = vmatpush2.msra.mxu0 0.0
    %244 = vmatprep.subr.mxu0 0.0
    %245 = vmatpush2.msra.mxu0 0.0
    %246 = vmatprep.subr.mxu0 0.0
    %247 = vmatpush2.msra.mxu0 0.0
    %248 = vmatprep.subr.mxu0 0.0
    %249 = vmatpush2.msra.mxu0 0.0
    %250 = vmatprep.subr.mxu0 0.0
    %251 = vmatpush2.msra.mxu0 0.0
    %252 = vmatprep.subr.mxu0 0.0
    %253 = vmatpush2.msra.mxu0 0.0
    %254 = vmatprep.subr.mxu0 0.0
    %255 = vmatpush2.msra.mxu0 0.0
    %256 = vmatprep.subr.mxu0 0.0
    %257 = vmatpush2.msra.mxu0 0.0
    %258 = vmatprep.subr.mxu0 0.0
    %259 = vmatpush2.msra.mxu0 0.0
    %260 = vmatprep.subr.mxu0 0.0
    %261 = vmatpush2.msra.mxu0 0.0
    %262 = vmatprep.subr.mxu0 0.0
    %263 = vmatpush2.msra.mxu0 0.0
    %264 = vmatprep.subr.mxu0 0.0
    %265 = vmatpush2.msra.mxu0 0.0
    %266 = vmatprep.subr.mxu0 0.0
    %267 = vmatpush2.msra.mxu0 0.0
    %268 = vmatprep.subr.mxu0 0.0
    %269 = vmatpush2.msra.mxu0 0.0
    %270 = vmatprep.mubr.f32.mxu0 0.0
    %271 = vmatmul.mubr.f32.gmra.mxu0 %v95
    %v272 = vpop.f32.mrf.mxu0
    %v273 = vadd.f32 %v198, %v272
    %v274 = vpop.f32.mrf.mxu0
    %275 = vmatprep.mubr.f32.mxu0 0.0
    %276 = vmatmul.mubr.f32.gmra.mxu0 %v96
    %v277 = vpop.f32.mrf.mxu0
    %v278 = vadd.f32 %v203, %v277
    %v279 = vpop.f32.mrf.mxu0
    %280 = vdwg.mxu0
    %v281 = vld [vmem:[%s4] sm:$0x1]
    %v283 = vlaneseq
    %v284 = vshrl.u32 %v283, 7
    %v285 = vsub.s32 0, %v284
    %v286 = vrot.slane %v281, %v285
    %v288 = vadd.f32 %v273, %v286
    %v289 = vadd.f32 %v278, %v286
    %v290 = vmax.f32 %v288, 0.0
    %v291 = vmax.f32 %v289, 0.0
    %v292 = vld [vmem:[#allocation10] sm:$0xff]
    %v293 = vld [vmem:[#allocation10 + $0x8] sm:$0xff]
    %v294 = vld [vmem:[#allocation10 + $0x10] sm:$0xff]
    %v295 = vld [vmem:[#allocation10 + $0x18] sm:$0xff]
    %v296 = vld [vmem:[#allocation10 + $0x20] sm:$0xff]
    %v297 = vld [vmem:[#allocation10 + $0x28] sm:$0xff]
    %v298 = vld [vmem:[#allocation10 + $0x30] sm:$0xff]
    %v299 = vld [vmem:[#allocation10 + $0x38] sm:$0xff]
    %v300 = vld [vmem:[#allocation10 + $0x40] sm:$0xff]
    %v301 = vld [vmem:[#allocation10 + $0x48] sm:$0xff]
    %v302 = vld [vmem:[#allocation10 + $0x50] sm:$0xff]
    %v303 = vld [vmem:[#allocation10 + $0x58] sm:$0xff]
    %v304 = vld [vmem:[#allocation10 + $0x60] sm:$0xff]
    %v305 = vld [vmem:[#allocation10 + $0x68] sm:$0xff]
    %v306 = vld [vmem:[#allocation10 + $0x70] sm:$0xff]
    %v307 = vld [vmem:[#allocation10 + $0x78] sm:$0xff]
    %v308 = vld [vmem:[%s6] sm:$0x1]
    %v310 = vlaneseq
    %v311 = vshrl.u32 %v310, 7
    %v312 = vsub.s32 0, %v311
    %v313 = vrot.slane %v308, %v312
    %315 = vmatprep.subr.mxu0 0.0
    %316 = vmatpush1.msra.mxu0 %v307
    %317 = vmatprep.subr.mxu0 0.0
    %318 = vmatpush1.msra.mxu0 %v306
    %319 = vmatprep.subr.mxu0 0.0
    %320 = vmatpush1.msra.mxu0 %v305
    %321 = vmatprep.subr.mxu0 0.0
    %322 = vmatpush1.msra.mxu0 %v304
    %323 = vmatprep.subr.mxu0 0.0
    %324 = vmatpush1.msra.mxu0 %v303
    %325 = vmatprep.subr.mxu0 0.0
    %326 = vmatpush1.msra.mxu0 %v302
    %327 = vmatprep.subr.mxu0 0.0
    %328 = vmatpush1.msra.mxu0 %v301
    %329 = vmatprep.subr.mxu0 0.0
    %330 = vmatpush1.msra.mxu0 %v300
    %331 = vmatprep.subr.mxu0 0.0
    %332 = vmatpush1.msra.mxu0 %v299
    %333 = vmatprep.subr.mxu0 0.0
    %334 = vmatpush1.msra.mxu0 %v298
    %335 = vmatprep.subr.mxu0 0.0
    %336 = vmatpush1.msra.mxu0 %v297
    %337 = vmatprep.subr.mxu0 0.0
    %338 = vmatpush1.msra.mxu0 %v296
    %339 = vmatprep.subr.mxu0 0.0
    %340 = vmatpush1.msra.mxu0 %v295
    %341 = vmatprep.subr.mxu0 0.0
    %342 = vmatpush1.msra.mxu0 %v294
    %343 = vmatprep.subr.mxu0 0.0
    %344 = vmatpush1.msra.mxu0 %v293
    %345 = vmatprep.subr.mxu0 0.0
    %346 = vmatpush1.msra.mxu0 %v292
    %347 = vmatprep.subr.mxu0 0.0
    %348 = vmatpush2.msra.mxu0 0.0
    %349 = vmatprep.subr.mxu0 0.0
    %350 = vmatpush2.msra.mxu0 0.0
    %351 = vmatprep.subr.mxu0 0.0
    %352 = vmatpush2.msra.mxu0 0.0
    %353 = vmatprep.subr.mxu0 0.0
    %354 = vmatpush2.msra.mxu0 0.0
    %355 = vmatprep.subr.mxu0 0.0
    %356 = vmatpush2.msra.mxu0 0.0
    %357 = vmatprep.subr.mxu0 0.0
    %358 = vmatpush2.msra.mxu0 0.0
    %359 = vmatprep.subr.mxu0 0.0
    %360 = vmatpush2.msra.mxu0 0.0
    %361 = vmatprep.subr.mxu0 0.0
    %362 = vmatpush2.msra.mxu0 0.0
    %363 = vmatprep.subr.mxu0 0.0
    %364 = vmatpush2.msra.mxu0 0.0
    %365 = vmatprep.subr.mxu0 0.0
    %366 = vmatpush2.msra.mxu0 0.0
    %367 = vmatprep.subr.mxu0 0.0
    %368 = vmatpush2.msra.mxu0 0.0
    %369 = vmatprep.subr.mxu0 0.0
    %370 = vmatpush2.msra.mxu0 0.0
    %371 = vmatprep.subr.mxu0 0.0
    %372 = vmatpush2.msra.mxu0 0.0
    %373 = vmatprep.subr.mxu0 0.0
    %374 = vmatpush2.msra.mxu0 0.0
    %375 = vmatprep.subr.mxu0 0.0
    %376 = vmatpush2.msra.mxu0 0.0
    %377 = vmatprep.subr.mxu0 0.0
    %378 = vmatpush2.msra.mxu0 0.0
    %379 = vmatprep.mubr.f32.mxu0 0.0
    %380 = vmatmul.mubr.f32.gmra.mxu0 %v290
    %v381 = vpop.f32.mrf.mxu0
    %v382 = vadd.f32 %v313, %v381
    %v383 = vpop.f32.mrf.mxu0
    %384 = vmatprep.mubr.f32.mxu0 0.0
    %385 = vmatmul.mubr.f32.gmra.mxu0 %v291
    %v386 = vpop.f32.mrf.mxu0
    %v387 = vadd.f32 %v313, %v386
    %v388 = vpop.f32.mrf.mxu0
    %389 = vdwg.mxu0
    %390 = vst [vmem:[#allocation11] sm:$0xff] %v382
    %391 = vst [vmem:[#allocation11 + $0x8] sm:$0xff] %v387
    // Predicated region
    $region50: #{tpu_custom_call.1} parent=1 // pred_check
      _
    $region51: #{tpu_custom_call.1} parent=1 // pred_check_branch
      %393 = sbr.rel (0) target = $region53
    $region52: #{tpu_custom_call.1} parent=1 // pred_region
      %s395 = ssub.s32 256, 256
      %396 = vsyncadd [#allocation4], %s395
      %s397 = sshll.u32 [#allocation11], 4
      %s398 = int_to_ptr.vmem [resolvable:$true] %s397
      %403 = dma.vmem_to_hbm [thread:$0]  %s398, 256, %s7, [#allocation4], 128, 128, 8
    $region53: #{tpu_custom_call.1} parent=1 // pred_fallthru
      _
    // Predicated region
    $region54: #{tpu_custom_call.1} parent=1 // pred_check
      _
    $region55: #{tpu_custom_call.1} parent=1 // pred_check_branch
      %405 = sbr.rel (0) target = $region57
    $region56: #{tpu_custom_call.1} parent=1 // pred_region
      %406 = dma.done [#allocation4], 256
    $region57: #{tpu_custom_call.1} parent=1 // pred_fallthru
      _
    %407 = vsyncpa [#allocation3], 1
    %408 = vsyncpa [#allocation6], 1
    %409 = vsyncpa [#allocation9], 1
    %410 = vsyncpa [#allocation4], 1

</llo_original>
